<compile_context>
chip_gen: v6e
topology: v6e:2x2x1
jax: 0.10.0
libtpu: 0.0.40
codegen_flags: <defaults>
</compile_context>

<pallas_src>
import jax
import jax.numpy as jnp
from jax.experimental import pallas as pl
from jax.experimental.pallas import tpu as pltpu


# ----------------------------- Pallas kernel ------------------------------- #
def prelu_rt_kernel(p_ref, z_ref, o_ref):
    # p_ref : SMEM (5*N,) scalar-prefetch of folded per-sample constants.
    # z_ref / o_ref : VMEM (TR, C) lane-dense activation tiles.
    i = pl.program_id(0)
    base = 5 * i
    a     = p_ref[base + 0]          # eta0
    b     = p_ref[base + 1]          # eta1 / eta4
    beta  = p_ref[base + 2]          # eta4
    shift = p_ref[base + 3]          # eta4 * eta2
    c     = p_ref[base + 4]          # eta3 - eta0 * eta2
    z = z_ref[...]
    t = beta * z - shift
    # Numerically stable softplus core: log1p(exp(t)) = max(t,0) + log1p(exp(-|t|))
    sp = jnp.maximum(t, 0.0) + jnp.log1p(jnp.exp(-jnp.abs(t)))
    o_ref[...] = a * z + b * sp + c


def prelu_rt_pallas(z, eta, *, lane_cols=512, tile_rows=1024):
    """z: [N, B, F] float32, eta: [N, 5] float32 -> [N, B, F] float32."""
    N, B, F = z.shape
    BF = B * F

    # --- lane-dense [R, C] factorization of each sample, with NO padding ---
    C = None
    if BF % 128 == 0:
        best = None
        c = lane_cols
        while c >= 128:
            if BF % c == 0:
                if best is None:
                    best = c
                if BF // c >= 8:          # also prefer sublane-dense rows
                    C = c
                    break
            c //= 2
        if C is None:
            C = best
    if C is not None:
        R = BF // C
        z3 = z.reshape(N, R, C)           # zero-copy reshape (contiguous)
    else:
        # TODO(synk): B*F not a multiple of 128 — keep the native [B, F] tiling
        # (lane dim F equals the full array extent, so the (8,128) rule holds).
        R, C = B, F
        z3 = z

    # --- row-tile selection ---
    if R > tile_rows:
        TR = tile_rows                     # multiple of 8 by construction
    elif N == 1 and R >= 16:
        # Split rows so v7x's 2nd TensorCore gets a block even at N == 1.
        TR = max(8, ((R + 1) // 2) // 8 * 8)
    else:
        TR = R                             # full extent per sample
    grid = (N, pl.cdiv(R, TR))             # ragged last tile masked by Pallas

    # --- fold scalar constants once in the tiny [N,5] wrapper math ---
    # out = a*z + b*log1p(exp(beta*z - shift)) + c
    e0, e1, e2, e3, e4 = (eta[:, k] for k in range(5))
    params = jnp.stack(
        [e0, e1 / e4, e4, e4 * e2, e3 - e0 * e2], axis=1
    ).reshape(-1).astype(jnp.float32)      # (5*N,) flat SMEM table (no 2D pad)

    out3 = pl.pallas_call(
        prelu_rt_kernel,
        out_shape=jax.ShapeDtypeStruct((N, R, C), z.dtype),
        grid_spec=pltpu.PrefetchScalarGridSpec(
            num_scalar_prefetch=1,
            grid=grid,
            in_specs=[pl.BlockSpec((pl.Squeezed(), TR, C),
                                   lambda i, r, p_s: (i, r, 0))],
            out_specs=pl.BlockSpec((pl.Squeezed(), TR, C),
                                   lambda i, r, p_s: (i, r, 0)),
        ),
        compiler_params=pltpu.CompilerParams(
            dimension_semantics=("parallel", "parallel")),
        cost_estimate=pl.CostEstimate(
            flops=int(9 * N * BF),
            transcendentals=int(2 * N * BF),
            bytes_accessed=int(8 * N * BF + params.size * 4)),
    )(params, z3)

    return out3.reshape(N, B, F)


# ------------------------------ JAX glue ------------------------------------ #
def mlp_eta(x, params):
    # TODO(synk): the real eta_estimator comes from torch.load('./utils/ReLU_param.package');
    # a synthetic 8->32->5 MLP with deterministic init stands in for it here.
    h = jnp.tanh(x @ params["w1"] + params["b1"])
    return jax.nn.sigmoid(h @ params["w2"] + params["b2"])


def compute_eta(rt_, N, epsilon, X_min, X_max, Y_min, Y_max, eta_params, key):
    """Builds eta[i, :]: the 5 per-noise-sample activation parameters."""
    # TODO(synk): in the torch module `self.eta` is a property that re-samples
    # noise on every access (even repeatedly inside the forward loop); we
    # evaluate it once per forward, matching the single `eta_noisy = self.eta`.
    rt_temp = jax.nn.sigmoid(rt_)                                   # [6]
    RTn = jnp.zeros((8,), jnp.float32).at[:6].set(rt_temp)
    RT = RTn * (X_max - X_min) + X_min                              # [8]

    noise = (jax.random.uniform(key, (N, 8), jnp.float32) * 2.0 - 1.0) * epsilon + 1.0
    RT_noisy = RT[None, :] * noise                                  # [N, 8]

    RT_extend = jnp.stack(
        [RT_noisy[:, 0], RT_noisy[:, 1], RT_noisy[:, 2], RT_noisy[:, 3],
         RT_noisy[:, 4], RT_noisy[:, 5],
         RT_noisy[:, 0] / RT_noisy[:, 1], RT_noisy[:, 4] / RT_noisy[:, 5]],
        axis=1)                                                     # [N, 8]
    RTn_extend = (RT_extend - X_min) / (X_max - X_min)              # [N, 8]

    eta_n = mlp_eta(RTn_extend, eta_params)                         # [N, 5]
    eta = eta_n * (Y_max - Y_min) + Y_min                           # [N, 5]
    # Guard the softplus beta away from 0 (review: 1/eta4 blows up otherwise).
    eta = eta.at[:, 4].set(jnp.maximum(eta[:, 4], 1e-6))
    return eta


# ------------------------------ main ---------------------------------------- #
if __name__ == "__main__":
    key = jax.random.PRNGKey(0)
    k_z, k_w1, k_w2, k_noise = jax.random.split(key, 4)

    # Small shapes: N = N_train noisy samples, B batch, F features.
    N, B, F = 4, 8, 128
    epsilon = 0.1

    z = jax.random.normal(k_z, (N, B, F), jnp.float32)

    # Deterministic "learned" rt_ (6 device geometry params) and normalization
    # constants that would have come from the saved packages.
    rt_ = jnp.array([0.1, 0.2, 0.3, 0.4, 0.5, 0.6], jnp.float32)
    X_min = jnp.linspace(0.5, 1.3, 8).astype(jnp.float32)
    X_max = (X_min + jnp.linspace(1.0, 2.0, 8)).astype(jnp.float32)
    # eta0..eta3 affine params; eta4 is the softplus beta, kept in [0.5, 2.0].
    Y_min = jnp.array([-1.0, -2.0, -0.5, 0.1, 0.5], jnp.float32)
    Y_max = jnp.array([1.0, 0.0, 0.5, 2.0, 2.0], jnp.float32)

    eta_params = {
        "w1": 0.2 * jax.random.normal(k_w1, (8, 32), jnp.float32),
        "b1": jnp.zeros((32,), jnp.float32),
        "w2": 0.2 * jax.random.normal(k_w2, (32, 5), jnp.float32),
        "b2": jnp.zeros((5,), jnp.float32),
    }

    eta = compute_eta(rt_, N, epsilon, X_min, X_max, Y_min, Y_max,
                      eta_params, k_noise)

    out = prelu_rt_pallas(z, eta)
    out = jax.block_until_ready(out)
    assert out.shape == (N, B, F)

    # Pure-JAX reference for the kernel's elementwise hot path (stable softplus).
    e0 = eta[:, 0][:, None, None]
    e1 = eta[:, 1][:, None, None]
    e2 = eta[:, 2][:, None, None]
    e3 = eta[:, 3][:, None, None]
    e4 = eta[:, 4][:, None, None]
    x = z - e2
    ref = e0 * x + e1 * (jax.nn.softplus(e4 * x) / e4) + e3
    assert jnp.allclose(out, ref, atol=1e-4, rtol=1e-4)

    print("KERNEL_OK")
</pallas_src>

<mosaic_0001>
module attributes {stable_mosaic.version = 11 : i64} {
  func.func @prelu_rt_kernel(%arg0: i32, %arg1: i32, %arg2: memref<20xf32, #tpu.memory_space<smem>>, %arg3: memref<1x8x128xf32, #tpu.memory_space<vmem>>, %arg4: memref<1x8x128xf32, #tpu.memory_space<vmem>>) attributes {dimension_semantics = [#tpu.dimension_semantics<parallel>, #tpu.dimension_semantics<parallel>], iteration_bounds = array<i64: 4, 1>, scalar_prefetch = 1 : i64, scratch_operands = 0 : i64, tpu.core_type = #tpu.core_type<tc>, window_params = [{transform_indices = @transform_0, window_bounds = array<i64: 1, 8, 128>}, {transform_indices = @transform_1, window_bounds = array<i64: 1, 8, 128>}]} {
    %c5_i32 = arith.constant 5 : i32
    %0 = arith.muli %c5_i32, %arg0 : i32
    %c0_i32 = arith.constant 0 : i32
    %1 = arith.addi %0, %c0_i32 : i32
    %2 = arith.index_cast %1 : i32 to index
    %3 = memref.load %arg2[%2] : memref<20xf32, #tpu.memory_space<smem>>
    %c1_i32 = arith.constant 1 : i32
    %4 = arith.addi %0, %c1_i32 : i32
    %5 = arith.index_cast %4 : i32 to index
    %6 = memref.load %arg2[%5] : memref<20xf32, #tpu.memory_space<smem>>
    %c2_i32 = arith.constant 2 : i32
    %7 = arith.addi %0, %c2_i32 : i32
    %8 = arith.index_cast %7 : i32 to index
    %9 = memref.load %arg2[%8] : memref<20xf32, #tpu.memory_space<smem>>
    %c3_i32 = arith.constant 3 : i32
    %10 = arith.addi %0, %c3_i32 : i32
    %11 = arith.index_cast %10 : i32 to index
    %12 = memref.load %arg2[%11] : memref<20xf32, #tpu.memory_space<smem>>
    %c4_i32 = arith.constant 4 : i32
    %13 = arith.addi %0, %c4_i32 : i32
    %14 = arith.index_cast %13 : i32 to index
    %15 = memref.load %arg2[%14] : memref<20xf32, #tpu.memory_space<smem>>
    %c0 = arith.constant 0 : index
    %c0_0 = arith.constant 0 : index
    %c0_1 = arith.constant 0 : index
    %16 = vector.load %arg3[%c0, %c0_0, %c0_1] : memref<1x8x128xf32, #tpu.memory_space<vmem>>, vector<1x8x128xf32>
    %17 = vector.shape_cast %16 : vector<1x8x128xf32> to vector<8x128xf32>
    %18 = vector.broadcast %9 : f32 to vector<8x128xf32>
    %19 = arith.mulf %18, %17 : vector<8x128xf32>
    %20 = vector.broadcast %12 : f32 to vector<8x128xf32>
    %21 = arith.subf %19, %20 : vector<8x128xf32>
    %cst = arith.constant 0.000000e+00 : f32
    %22 = vector.broadcast %cst : f32 to vector<8x128xf32>
    %23 = arith.maximumf %21, %22 : vector<8x128xf32>
    %24 = math.absf %21 : vector<8x128xf32>
    %cst_2 = arith.constant 0.000000e+00 : f32
    %25 = vector.broadcast %cst_2 : f32 to vector<8x128xf32>
    %26 = arith.subf %25, %24 : vector<8x128xf32>
    %27 = math.exp %26 : vector<8x128xf32>
    %28 = math.log1p %27 : vector<8x128xf32>
    %29 = arith.addf %23, %28 : vector<8x128xf32>
    %30 = vector.broadcast %3 : f32 to vector<8x128xf32>
    %31 = arith.mulf %30, %17 : vector<8x128xf32>
    %32 = vector.broadcast %6 : f32 to vector<8x128xf32>
    %33 = arith.mulf %32, %29 : vector<8x128xf32>
    %34 = arith.addf %31, %33 : vector<8x128xf32>
    %35 = vector.broadcast %15 : f32 to vector<8x128xf32>
    %36 = arith.addf %34, %35 : vector<8x128xf32>
    %c0_3 = arith.constant 0 : index
    %c0_4 = arith.constant 0 : index
    %c0_5 = arith.constant 0 : index
    %37 = vector.load %arg4[%c0_3, %c0_4, %c0_5] : memref<1x8x128xf32, #tpu.memory_space<vmem>>, vector<1x8x128xf32>
    %38 = vector.shape_cast %37 : vector<1x8x128xf32> to vector<8x128xf32>
    %39 = vector.shape_cast %36 : vector<8x128xf32> to vector<1x8x128xf32>
    tpu.vector_store %arg4[%c0_3, %c0_4, %c0_5], %39 {strides = array<i32>} : memref<1x8x128xf32, #tpu.memory_space<vmem>>, vector<1x8x128xf32>,
    return
  }
  func.func @transform_0(%arg0: i32, %arg1: i32, %arg2: memref<20xf32, #tpu.memory_space<smem>>) -> (i32, i32, i32) {
    %c0_i32 = arith.constant 0 : i32
    %c0_i32_0 = arith.constant 0 : i32
    return %arg0, %arg1, %c0_i32 : i32, i32, i32
  }
  func.func @transform_1(%arg0: i32, %arg1: i32, %arg2: memref<20xf32, #tpu.memory_space<smem>>) -> (i32, i32, i32) {
    %c0_i32 = arith.constant 0 : i32
    %c0_i32_0 = arith.constant 0 : i32
    return %arg0, %arg1, %c0_i32 : i32, i32, i32
  }
}

</mosaic_0001>

<llo_original>
// kernel: tpu_custom_call.1
$region0: #{tpu_custom_call.1}
  #allocation0 [shape = 'u32[]', space=smem, size = 0x4, offset = 0x4, fixed_abs, tag = 'smem constant byte address 0x4 - core index']
  #allocation1 [shape = 'u32[144,128]{1,0:T(1,128)}', space=vmem, size = 0x12000, scoped, tag = 'internal scratch']
  #allocation2 [shape = 's32[1]{0}', space=sflag, size = 0x4, scoped, tag = 'scoped memory for tpu_custom_call.1']
  #allocation3 [shape = 'u8[512]{0}', space=smem, size = 0x200, scoped, tag = 'prefetched SMEM operand 0']
  %s0 = inlined_call_operand.hbm [shape: f32[20], index: 0, kind: input, shape index: {}]
  %s1 = inlined_call_operand.hbm [shape: f32[4,8,128], index: 1, kind: input, shape index: {}]
  %s2 = inlined_call_operand.hbm [shape: f32[4,8,128], index: 2, kind: output, shape index: {}]
  %s3 = sld [smem:[#allocation0]]
  $region41: #{tpu_custom_call.1} parent=0
    _
  %s5 = ssub.s32 1, %s3
  %s6 = scalar_select 0, %s5, %s3
  %8 = dma.hbm_to_smem %s0, 16, [#allocation3], [#allocation2]
  %9 = dma.done [#allocation2], 16
  %10 = sfence
  $region1: #{tpu_custom_call.1} parent=0
    #allocation4 [shape = 'u8[8192]{0}', space=vmem, size = 0x2000, scoped, tag = 'input window, operand 1']
    #allocation5 [shape = 's32[2]{0}', space=sflag, size = 0x8, scoped, tag = 'scoped memory for tpu_custom_call.1']
    #allocation6 [shape = 's32[2]{0}', space=sflag, size = 0x8, scoped, tag = 'scoped memory for tpu_custom_call.1']
    #allocation7 [shape = 'u8[8192]{0}', space=vmem, size = 0x2000, scoped, tag = 'output window, operand 0']
    %11 = vsyncpa [#allocation5], 0
    %s12 = scalar_lea.sflag [#allocation5], 1
    %13 = vsyncpa %s12, 0
    %14 = vsyncpa [#allocation6], 0
    %s15 = scalar_lea.sflag [#allocation6], 1
    %16 = vsyncpa %s15, 0
    loop: start=0, step=1, limit=6
    $region2: #{tpu_custom_call.1} parent=1 // loop_pre_header
      _
    $region3: #{tpu_custom_call.1} parent=1 // loop_header
      %s18 = sphi 0, %s22
      %p19 = scmp.ge.s32.totalorder %s18, 6
      %s25 = sphi 0, %s37
      %s26 = sphi 0, %s33
      %s27 = sphi 0, %s25
      %s28 = sphi 0, %s26
      %s29 = sphi 0, %s27
      %s30 = sphi 0, %s28
      %s42 = sphi 0, %s44
      %s45 = sphi 0, %s42
      %s46 = sphi 0, %s45
      %s62 = sphi 0, %s46
      %s70 = sphi 0, %s72
      %s73 = sphi 0, %s70
      %s74 = sphi 0, %s73
      %s90 = sphi 0, %s74
    $region4: #{tpu_custom_call.1} parent=1 // loop_header_branch
      %21 = sbr.rel (%p19) target = $region8
    $region5: #{tpu_custom_call.1} parent=1 // loop_body
      %s23 = ssub.s32 %s18, 1
      %s24 = ssub.s32 %s18, 2
      %s31 = sadd.s32 1, %s26
      %p32 = scmp.ge.s32.totalorder %s31, 1
      %s33 = scalar_select %p32, 0, %s31
      %s34 = sadd.s32 1, %s25
      %s35 = scalar_select %p32, %s34, %s25
      %p36 = scmp.ge.s32.totalorder %s35, 4
      %s37 = scalar_select %p36, 0, %s35
      %s38 = ssub.s32 %s25, %s37
      %s39 = ssub.s32 %s26, %s33
      %s40 = sor.u32 %s38, %s39
      %p41 = scmp.eq.s32.totalorder %s40, 0
      %s43 = sadd.s32 %s42, 1
      %s44 = scalar_select %p41, %s42, %s43
      %p47 = pneg %p41
      %p48 = scmp.eq.s32.totalorder %s18, 3
      %p49 = por %p47, %p48
      %p50 = scmp.ne.s32.totalorder %s42, %s45
      %p51 = scmp.eq.s32.totalorder %s18, 0
      %p52 = por %p50, %p51
      %p53 = scmp.ne.s32.totalorder %s42, %s45
      %p54 = scmp.eq.s32.totalorder %s23, 3
      %p55 = por %p53, %p54
      %p56 = scmp.ne.s32.totalorder %s45, %s46
      %p57 = scmp.eq.s32.totalorder %s23, 0
      %p58 = por %p56, %p57
      %p59 = scmp.ne.s32.totalorder %s45, %s46
      %p60 = scmp.eq.s32.totalorder %s24, 3
      %p61 = por %p59, %p60
      %p63 = scmp.ne.s32.totalorder %s46, %s62
      %p64 = scmp.eq.s32.totalorder %s24, 0
      %p65 = por %p63, %p64
      %s66 = ssub.s32 %s25, %s37
      %s67 = ssub.s32 %s26, %s33
      %s68 = sor.u32 %s66, %s67
      %p69 = scmp.eq.s32.totalorder %s68, 0
      %s71 = sadd.s32 %s70, 1
      %s72 = scalar_select %p69, %s70, %s71
      %p75 = pneg %p69
      %p76 = scmp.eq.s32.totalorder %s18, 3
      %p77 = por %p75, %p76
      %p78 = scmp.ne.s32.totalorder %s70, %s73
      %p79 = scmp.eq.s32.totalorder %s18, 0
      %p80 = por %p78, %p79
      %p81 = scmp.ne.s32.totalorder %s70, %s73
      %p82 = scmp.eq.s32.totalorder %s23, 3
      %p83 = por %p81, %p82
      %p84 = scmp.ne.s32.totalorder %s73, %s74
      %p85 = scmp.eq.s32.totalorder %s23, 0
      %p86 = por %p84, %p85
      %p87 = scmp.ne.s32.totalorder %s73, %s74
      %p88 = scmp.eq.s32.totalorder %s24, 3
      %p89 = por %p87, %p88
      %p91 = scmp.ne.s32.totalorder %s74, %s90
      %p92 = scmp.eq.s32.totalorder %s24, 0
      %p93 = por %p91, %p92
      %p94 = scmp.le.s32.totalorder 1, %s18
      %p95 = scmp.lt.s32.totalorder %s18, 5
      %p96 = pnand %p94, %p95
      %p97 = pneg %p96
      // Predicated region
      $region9: #{tpu_custom_call.1} parent=5 // pred_check
        _
      $region10: #{tpu_custom_call.1} parent=5 // pred_check_branch
        %99 = sbr.rel (%p96) target = $region12
      $region11: #{tpu_custom_call.1} parent=5 // pred_region
        %s100 = ssub.s32 %s18, 1
      $region12: #{tpu_custom_call.1} parent=5 // pred_fallthru
        _
      %p101 = scmp.lt.s32.totalorder %s18, 4
      // Predicated region
      $region13: #{tpu_custom_call.1} parent=5 // pred_check
        %p102 = pneg %p101
      $region14: #{tpu_custom_call.1} parent=5 // pred_check_branch
        %104 = sbr.rel (%p102) target = $region16
      $region15: #{tpu_custom_call.1} parent=5 // pred_region
        // Predicated region
        $region17: #{tpu_custom_call.1} parent=15 // pred_check
          %p105 = pneg %p52
        $region18: #{tpu_custom_call.1} parent=15 // pred_check_branch
          %107 = sbr.rel (%p105) target = $region20
        $region19: #{tpu_custom_call.1} parent=15 // pred_region
          %s108 = sand.u32 %s42, 1
          %s109 = scalar_lea.sflag [#allocation5], %s108
          %s110 = sand.u32 %s42, 1
          %s111 = smul.addr %s110, 8
          %s112 = scalar_lea.vmem [#allocation4], %s111
          %s114 = ssub.s32 128, 128
          %115 = vsyncadd %s109, %s114
          %s116 = sadd.s32 %s26, %s25
          %s117 = smul.addr %s116, 128
          %s118 = scalar_lea.hbm %s1, %s117
          %s120 = sshll.u32 %s112, 4
          %s121 = int_to_ptr.vmem [resolvable:$true] %s120
          %123 = dma.hbm_to_vmem [thread:$0]  %s118, 128, %s121, %s109
        $region20: #{tpu_custom_call.1} parent=15 // pred_fallthru
          _
      $region16: #{tpu_custom_call.1} parent=5 // pred_fallthru
        _
      %p124 = scmp.le.s32.totalorder 1, %s18
      %p125 = scmp.lt.s32.totalorder %s18, 5
      %p126 = pnand %p124, %p125
      %p127 = pneg %p126
      // Predicated region
      $region21: #{tpu_custom_call.1} parent=5 // pred_check
        _
      $region22: #{tpu_custom_call.1} parent=5 // pred_check_branch
        %129 = sbr.rel (%p126) target = $region24
      $region23: #{tpu_custom_call.1} parent=5 // pred_region
        %s130 = ssub.s32 %s18, 1
        %s131 = sand.u32 %s45, 1
        %s132 = scalar_lea.sflag [#allocation5], %s131
        %s133 = sand.u32 %s45, 1
        %s134 = smul.addr %s133, 8
        %s135 = scalar_lea.vmem [#allocation4], %s134
        // Predicated region
        $region25: #{tpu_custom_call.1} parent=23 // pred_check
          %p136 = pneg %p58
        $region26: #{tpu_custom_call.1} parent=23 // pred_check_branch
          %138 = sbr.rel (%p136) target = $region28
        $region27: #{tpu_custom_call.1} parent=23 // pred_region
          %139 = dma.done %s132, 128
        $region28: #{tpu_custom_call.1} parent=23 // pred_fallthru
          _
        %s140 = sand.u32 %s45, 1
        %s141 = scalar_lea.sflag [#allocation5], %s140
        %s142 = sand.u32 %s45, 1
        %s143 = smul.addr %s142, 8
        %s144 = scalar_lea.vmem [#allocation4], %s143
        %p145 = pneg %p58
        %p146 = pneg %p55
        %p147 = pneg %p86
        %p148 = pneg %p83
        %s149 = sand.u32 %s73, 1
        %s150 = scalar_lea.sflag [#allocation6], %s149
        %s151 = sand.u32 %s73, 1
        %s152 = smul.addr %s151, 8
        %s153 = scalar_lea.vmem [#allocation7], %s152
        %s154 = smul.u32 %s27, 5
        %s155 = sld [smem:[#allocation3 + %s154]]
        %s156 = sadd.s32 %s154, 1
        %s157 = sld [smem:[#allocation3 + %s156]]
        %s158 = sadd.s32 %s154, 2
        %s159 = sld [smem:[#allocation3 + %s158]]
        %s160 = sadd.s32 %s154, 3
        %s161 = sld [smem:[#allocation3 + %s160]]
        %s162 = sadd.s32 %s154, 4
        %s163 = sld [smem:[#allocation3 + %s162]]
        %v164 = vld [vmem:[%s135] sm:$0xff]
        %v165 = vstv %s159
        %v166 = vmul.f32 %v165, %v164
        %v167 = vstv %s161
        %v168 = vsub.f32 %v166, %v167
        %v169 = vmax.f32 %v168, 0.0
        %v170 = vand.u32 2147483647, %v168
        %v171 = vsub.f32 0.0, %v170
        %v172 = vmul.f32 %v171, 1.442695
        %v173 = vpow.pop %v172
        %v174 = vadd.f32 %v173, 1.0
        %v175 = vlog2.pop %v174
        %v176 = vmul.f32 %v175, 0.6931472
        %v177 = vmul.f32 -0.5, %v173
        %v178 = vadd.f32 %v177, 1.0
        %v179 = vmul.f32 %v178, %v173
        %v180 = vand.u32 2147483647, %v173
        %vm181 = vcmp.lt.f32.partialorder %v180, 0.0004427343
        %v182 = vsel %vm181, %v179, %v176
        %v183 = vadd.f32 %v169, %v182
        %v184 = vstv %s155
        %v185 = vmul.f32 %v184, %v164
        %v186 = vstv %s157
        %v187 = vmul.f32 %v186, %v183
        %v188 = vadd.f32 %v185, %v187
        %v189 = vstv %s163
        %v190 = vadd.f32 %v188, %v189
        %191 = vst [vmem:[%s153] sm:$0xff] %v190
        %s192 = sand.u32 %s73, 1
        %s193 = scalar_lea.sflag [#allocation6], %s192
        %s194 = sand.u32 %s73, 1
        %s195 = smul.addr %s194, 8
        %s196 = scalar_lea.vmem [#allocation7], %s195
        // Predicated region
        $region29: #{tpu_custom_call.1} parent=23 // pred_check
          %p197 = pneg %p83
        $region30: #{tpu_custom_call.1} parent=23 // pred_check_branch
          %199 = sbr.rel (%p197) target = $region32
        $region31: #{tpu_custom_call.1} parent=23 // pred_region
          %s201 = ssub.s32 128, 128
          %202 = vsyncadd %s193, %s201
          %s203 = sadd.s32 %s28, %s27
          %s204 = smul.addr %s203, 128
          %s205 = scalar_lea.hbm %s2, %s204
          %s207 = sshll.u32 %s196, 4
          %s208 = int_to_ptr.vmem [resolvable:$true] %s207
          %210 = dma.vmem_to_hbm [thread:$0]  %s208, 128, %s205, %s193
        $region32: #{tpu_custom_call.1} parent=23 // pred_fallthru
          _
      $region24: #{tpu_custom_call.1} parent=5 // pred_fallthru
        _
      %p211 = scmp.le.s32.totalorder 2, %s18
      // Predicated region
      $region33: #{tpu_custom_call.1} parent=5 // pred_check
        %p212 = pneg %p211
      $region34: #{tpu_custom_call.1} parent=5 // pred_check_branch
        %214 = sbr.rel (%p212) target = $region36
      $region35: #{tpu_custom_call.1} parent=5 // pred_region
        %s215 = ssub.s32 %s18, 2
        // Predicated region
        $region37: #{tpu_custom_call.1} parent=35 // pred_check
          %p216 = pneg %p89
        $region38: #{tpu_custom_call.1} parent=35 // pred_check_branch
          %218 = sbr.rel (%p216) target = $region40
        $region39: #{tpu_custom_call.1} parent=35 // pred_region
          %s219 = sand.u32 %s74, 1
          %s220 = scalar_lea.sflag [#allocation6], %s219
          %s221 = sand.u32 %s74, 1
          %s222 = smul.addr %s221, 8
          %s223 = scalar_lea.vmem [#allocation7], %s222
          %224 = dma.done %s220, 128
        $region40: #{tpu_custom_call.1} parent=35 // pred_fallthru
          _
      $region36: #{tpu_custom_call.1} parent=5 // pred_fallthru
        _
    $region6: #{tpu_custom_call.1} parent=1 // loop_footer
      %s22 = sadd.s32 1, %s18
    $region7: #{tpu_custom_call.1} parent=1 // loop_footer_branch
      %17 = sbr.rel target = $region3
    $region8: #{tpu_custom_call.1} parent=1 // loop_exit
      _
    %225 = vsyncpa [#allocation5], 1
    %s226 = scalar_lea.sflag [#allocation5], 1
    %227 = vsyncpa %s226, 1
    %228 = vsyncpa [#allocation6], 1
    %s229 = scalar_lea.sflag [#allocation6], 1
    %230 = vsyncpa %s229, 1

</llo_original>
